<compile_context>
chip_gen: v7x
topology: tpu7x:2x2x1
jax: 0.10.0
libtpu: 0.0.40
codegen_flags: <defaults>
</compile_context>

<pallas_src>
import jax
import jax.numpy as jnp
from jax.experimental import pallas as pl
from jax.experimental.pallas import tpu as pltpu

# ---- Hyperparameters matching typical SAC defaults ----
CRITIC_HIDDEN_0 = 64
CRITIC_HIDDEN_1 = 64
LOG_STD_MIN = -20.0
LOG_STD_MAX = 2.0


def actor_kernel(x_ref, w_ref, b_ref, lo_ref, hi_ref, out_ref):
    # (TB, indim) @ (indim, 2A) on the MXU, f32 accumulate.
    y = jnp.dot(x_ref[...], w_ref[...], preferred_element_type=jnp.float32)
    y = y + b_ref[...]
    # Broadcast clip: lo/hi rows are (-inf, +inf) for the mean columns and
    # (LOG_STD_MIN, LOG_STD_MAX) for the log_std columns -> two VPU ops,
    # no iota / compare / select.
    y = jnp.minimum(jnp.maximum(y, lo_ref[...]), hi_ref[...])
    out_ref[...] = y.astype(out_ref.dtype)


def _ceil_to(x, m):
    return -(-x // m) * m


def actor_forward(state, params, *, block_b=2048):
    """state: (B, indim) float32. params: dict of weights/biases.

    Returns (mean, log_std), each (B, actions_dim) float32.
    """
    B, indim = state.shape
    A = params["wm"].shape[1]
    out_dim = 2 * A

    # ---- Collapse the affine chain (no activations in the reference forward).
    # NOTE: if ReLUs were ever re-enabled in the model, this collapse would be
    # invalid and the 3-matmul kernel variant must be restored.
    wh = jnp.concatenate([params["wm"], params["ws"]], axis=1)            # (h1, 2A)
    bh = jnp.concatenate([params["bm"], params["bs"]], axis=1)            # (1, 2A)
    w_eff = params["w0"] @ params["w1"] @ wh                              # (indim, 2A)
    b_eff = (params["b0"] @ params["w1"] + params["b1"]) @ wh + bh        # (1, 2A)

    # Per-column clip bounds: mean columns unclipped, log_std columns clipped.
    lo = jnp.concatenate([jnp.full((1, A), -jnp.inf, jnp.float32),
                          jnp.full((1, A), LOG_STD_MIN, jnp.float32)], axis=1)
    hi = jnp.concatenate([jnp.full((1, A), jnp.inf, jnp.float32),
                          jnp.full((1, A), LOG_STD_MAX, jnp.float32)], axis=1)

    # ---- Batch tiling: biggest tile within budget; >= 2 grid steps for larger
    # batches so the v7x megacore "parallel" axis shards across both TCs.
    block_b = _ceil_to(max(8, block_b), 8)
    b8 = _ceil_to(max(B, 8), 8)
    n_tiles = max(1, -(-b8 // block_b))
    if n_tiles == 1 and b8 >= 1024:
        n_tiles = 2
    tb = _ceil_to(-(-b8 // n_tiles), 8)
    grid = (-(-B // tb),)
    # No jnp.pad of `state`: Pallas masks the OOB rows of the ragged last tile.

    flops = 2 * B * indim * out_dim
    bytes_accessed = 4 * (B * indim + B * out_dim
                          + w_eff.size + b_eff.size + lo.size + hi.size)

    # VMEM budget: double-buffered x/out tiles + resident weights + margin.
    tile_bytes = 2 * 4 * tb * (indim + out_dim)
    vmem_limit = int(min(32 << 20, max(4 << 20, 2 * tile_bytes + (1 << 20))))

    full2d = lambda arr: pl.BlockSpec(arr.shape, lambda i: (0, 0))

    out = pl.pallas_call(
        actor_kernel,
        out_shape=jax.ShapeDtypeStruct((B, out_dim), jnp.float32),
        grid=grid,
        in_specs=[pl.BlockSpec((tb, indim), lambda i: (i, 0)),
                  full2d(w_eff), full2d(b_eff), full2d(lo), full2d(hi)],
        out_specs=pl.BlockSpec((tb, out_dim), lambda i: (i, 0)),
        compiler_params=pltpu.CompilerParams(
            dimension_semantics=("parallel",),   # megacore shards batch tiles
            vmem_limit_bytes=vmem_limit),
        cost_estimate=pl.CostEstimate(flops=flops, transcendentals=0,
                                      bytes_accessed=bytes_accessed),
    )(state, w_eff, b_eff, lo, hi)

    mean = out[:, :A]
    log_std = out[:, A:]
    return mean, log_std


def init_actor_params(key, indim, hidden_0, hidden_1, actions_dim):
    """Deterministic init mirroring PyTorch Linear default (U(-1/sqrt(fan_in), +))."""
    def linear(k, fan_in, fan_out):
        kw, kb = jax.random.split(k)
        bound = 1.0 / jnp.sqrt(fan_in)
        w = jax.random.uniform(kw, (fan_in, fan_out), jnp.float32, -bound, bound)
        b = jax.random.uniform(kb, (1, fan_out), jnp.float32, -bound, bound)
        return w, b

    k0, k1, k2, k3 = jax.random.split(key, 4)
    w0, b0 = linear(k0, indim, hidden_0)
    w1, b1 = linear(k1, hidden_0, hidden_1)
    wm, bm = linear(k2, hidden_1, actions_dim)
    ws, bs = linear(k3, hidden_1, actions_dim)
    return dict(w0=w0, b0=b0, w1=w1, b1=b1, wm=wm, bm=bm, ws=ws, bs=bs)


def _reference(state, params):
    # Mirrors the PyTorch forward exactly (chained Linears, no activation).
    h0 = state @ params["w0"] + params["b0"]
    h1 = h0 @ params["w1"] + params["b1"]
    mean = h1 @ params["wm"] + params["bm"]
    log_std = jnp.clip(h1 @ params["ws"] + params["bs"], LOG_STD_MIN, LOG_STD_MAX)
    return mean, log_std


if __name__ == "__main__":
    key = jax.random.PRNGKey(0)
    k_params, k_state1, k_state2 = jax.random.split(key, 3)

    INDIM, ACTIONS = 32, 8
    params = init_actor_params(k_params, INDIM, CRITIC_HIDDEN_0, CRITIC_HIDDEN_1, ACTIONS)

    # Case 1: batch that is already a multiple of the sublane tile (1 grid step).
    B1 = 8
    state1 = jax.random.normal(k_state1, (B1, INDIM), jnp.float32)
    mean1, log_std1 = actor_forward(state1, params)
    jax.block_until_ready((mean1, log_std1))
    mref1, lref1 = _reference(state1, params)
    assert mean1.shape == (B1, ACTIONS) and log_std1.shape == (B1, ACTIONS)
    assert jnp.allclose(mean1, mref1, atol=1e-4, rtol=1e-4)
    assert jnp.allclose(log_std1, lref1, atol=1e-4, rtol=1e-4)

    # Case 2: ragged batch with a forced 2-step grid (exercises the masked
    # tail tile that replaces the old wrapper-side jnp.pad copy).
    B2 = 12
    state2 = jax.random.normal(k_state2, (B2, INDIM), jnp.float32)
    mean2, log_std2 = actor_forward(state2, params, block_b=8)
    jax.block_until_ready((mean2, log_std2))
    mref2, lref2 = _reference(state2, params)
    assert mean2.shape == (B2, ACTIONS) and log_std2.shape == (B2, ACTIONS)
    assert jnp.allclose(mean2, mref2, atol=1e-4, rtol=1e-4)
    assert jnp.allclose(log_std2, lref2, atol=1e-4, rtol=1e-4)

    print("KERNEL_OK")
</pallas_src>

<mosaic_0001>
module attributes {stable_mosaic.version = 11 : i64} {
  func.func @actor_kernel(%arg0: i32, %arg1: memref<8x32xf32, #tpu.memory_space<vmem>>, %arg2: memref<32x16xf32, #tpu.memory_space<vmem>>, %arg3: memref<1x16xf32, #tpu.memory_space<vmem>>, %arg4: memref<1x16xf32, #tpu.memory_space<vmem>>, %arg5: memref<1x16xf32, #tpu.memory_space<vmem>>, %arg6: memref<8x16xf32, #tpu.memory_space<vmem>>) attributes {dimension_semantics = [#tpu.dimension_semantics<parallel>], iteration_bounds = array<i64: 1>, scalar_prefetch = 0 : i64, scratch_operands = 0 : i64, tpu.core_type = #tpu.core_type<tc>, window_params = [{transform_indices = @transform_0, window_bounds = array<i64: 8, 32>}, {pipeline_mode = #tpu.pipeline_mode<synchronous>, transform_indices = @transform_1, window_bounds = array<i64: 32, 16>}, {pipeline_mode = #tpu.pipeline_mode<synchronous>, transform_indices = @transform_2, window_bounds = array<i64: 1, 16>}, {pipeline_mode = #tpu.pipeline_mode<synchronous>, transform_indices = @transform_3, window_bounds = array<i64: 1, 16>}, {pipeline_mode = #tpu.pipeline_mode<synchronous>, transform_indices = @transform_4, window_bounds = array<i64: 1, 16>}, {transform_indices = @transform_5, window_bounds = array<i64: 8, 16>}]} {
    %c0 = arith.constant 0 : index
    %c0_0 = arith.constant 0 : index
    %0 = vector.load %arg1[%c0, %c0_0] : memref<8x32xf32, #tpu.memory_space<vmem>>, vector<8x32xf32>
    %c0_1 = arith.constant 0 : index
    %c0_2 = arith.constant 0 : index
    %1 = vector.load %arg2[%c0_1, %c0_2] : memref<32x16xf32, #tpu.memory_space<vmem>>, vector<32x16xf32>
    %cst = arith.constant dense<0.000000e+00> : vector<8x16xf32>
    %2 = tpu.matmul %0, %1, %cst {dimension_numbers = #tpu.dot_dimension_numbers<[1], [0], [0], [1], [0, 0, 1, 1], [], []>} : vector<8x32xf32>, vector<32x16xf32>, vector<8x16xf32> -> vector<8x16xf32>
    %c0_3 = arith.constant 0 : index
    %c0_4 = arith.constant 0 : index
    %3 = vector.load %arg3[%c0_3, %c0_4] : memref<1x16xf32, #tpu.memory_space<vmem>>, vector<1x16xf32>
    %4 = vector.broadcast %3 : vector<1x16xf32> to vector<8x16xf32>
    %5 = arith.addf %2, %4 : vector<8x16xf32>
    %c0_5 = arith.constant 0 : index
    %c0_6 = arith.constant 0 : index
    %6 = vector.load %arg4[%c0_5, %c0_6] : memref<1x16xf32, #tpu.memory_space<vmem>>, vector<1x16xf32>
    %7 = vector.broadcast %6 : vector<1x16xf32> to vector<8x16xf32>
    %8 = arith.maximumf %5, %7 : vector<8x16xf32>
    %c0_7 = arith.constant 0 : index
    %c0_8 = arith.constant 0 : index
    %9 = vector.load %arg5[%c0_7, %c0_8] : memref<1x16xf32, #tpu.memory_space<vmem>>, vector<1x16xf32>
    %10 = vector.broadcast %9 : vector<1x16xf32> to vector<8x16xf32>
    %11 = arith.minimumf %8, %10 : vector<8x16xf32>
    %c0_9 = arith.constant 0 : index
    %c0_10 = arith.constant 0 : index
    %12 = vector.load %arg6[%c0_9, %c0_10] : memref<8x16xf32, #tpu.memory_space<vmem>>, vector<8x16xf32>
    tpu.vector_store %arg6[%c0_9, %c0_10], %11 {strides = array<i32>} : memref<8x16xf32, #tpu.memory_space<vmem>>, vector<8x16xf32>,
    return
  }
  func.func @transform_0(%arg0: i32) -> (i32, i32) {
    %c0_i32 = arith.constant 0 : i32
    %c0_i32_0 = arith.constant 0 : i32
    return %arg0, %c0_i32 : i32, i32
  }
  func.func @transform_1(%arg0: i32) -> (i32, i32) {
    %c0_i32 = arith.constant 0 : i32
    %c0_i32_0 = arith.constant 0 : i32
    %c0_i32_1 = arith.constant 0 : i32
    return %c0_i32, %c0_i32_0 : i32, i32
  }
  func.func @transform_2(%arg0: i32) -> (i32, i32) {
    %c0_i32 = arith.constant 0 : i32
    %c0_i32_0 = arith.constant 0 : i32
    %c0_i32_1 = arith.constant 0 : i32
    return %c0_i32, %c0_i32_0 : i32, i32
  }
  func.func @transform_3(%arg0: i32) -> (i32, i32) {
    %c0_i32 = arith.constant 0 : i32
    %c0_i32_0 = arith.constant 0 : i32
    %c0_i32_1 = arith.constant 0 : i32
    return %c0_i32, %c0_i32_0 : i32, i32
  }
  func.func @transform_4(%arg0: i32) -> (i32, i32) {
    %c0_i32 = arith.constant 0 : i32
    %c0_i32_0 = arith.constant 0 : i32
    %c0_i32_1 = arith.constant 0 : i32
    return %c0_i32, %c0_i32_0 : i32, i32
  }
  func.func @transform_5(%arg0: i32) -> (i32, i32) {
    %c0_i32 = arith.constant 0 : i32
    %c0_i32_0 = arith.constant 0 : i32
    return %arg0, %c0_i32 : i32, i32
  }
}

</mosaic_0001>

<llo_original>
// kernel: tpu_custom_call.1
$region0: #{tpu_custom_call.1}
  #allocation0 [shape = 'u32[]', space=smem, size = 0x4, offset = 0x4, fixed_abs, tag = 'smem constant byte address 0x4 - core index']
  #allocation1 [shape = 'u32[144,128]{1,0:T(1,128)}', space=vmem, size = 0x12000, scoped, tag = 'internal scratch']
  %s0 = inlined_call_operand.vmem [shape: f32[8,32], index: 0, kind: input, shape index: {}]
  %s1 = inlined_call_operand.vmem [shape: f32[32,16], index: 1, kind: input, shape index: {}]
  %s2 = inlined_call_operand.vmem [shape: f32[1,16], index: 2, kind: input, shape index: {}]
  %s3 = inlined_call_operand.vmem [shape: f32[1,16], index: 3, kind: input, shape index: {}]
  %s4 = inlined_call_operand.vmem [shape: f32[1,16], index: 4, kind: input, shape index: {}]
  %s5 = inlined_call_operand.hbm [shape: f32[8,16], index: 5, kind: output, shape index: {}]
  %s6 = sld [smem:[#allocation0]]
  $region30: #{tpu_custom_call.1} parent=0
    _
  %s8 = ssub.s32 1, %s6
  %s9 = scalar_select 0, %s8, %s6
  $region1: #{tpu_custom_call.1} parent=0
    #allocation2 [shape = 'u8[4096]{0}', space=vmem, size = 0x1000, scoped, tag = 'output window, operand 0, single buffered']
    #allocation3 [shape = 's32[1]{0}', space=sflag, size = 0x4, scoped, tag = 'scoped memory for tpu_custom_call.1']
    %10 = vsyncpa [#allocation3], 0
    // Predicated region
    $region2: #{tpu_custom_call.1} parent=1 // pred_check
      _
    $region3: #{tpu_custom_call.1} parent=1 // pred_check_branch
      %12 = sbr.rel (0) target = $region5
    $region4: #{tpu_custom_call.1} parent=1 // pred_region
      _
    $region5: #{tpu_custom_call.1} parent=1 // pred_fallthru
      _
    // Predicated region
    $region6: #{tpu_custom_call.1} parent=1 // pred_check
      _
    $region7: #{tpu_custom_call.1} parent=1 // pred_check_branch
      %14 = sbr.rel (0) target = $region9
    $region8: #{tpu_custom_call.1} parent=1 // pred_region
      _
    $region9: #{tpu_custom_call.1} parent=1 // pred_fallthru
      _
    // Predicated region
    $region10: #{tpu_custom_call.1} parent=1 // pred_check
      _
    $region11: #{tpu_custom_call.1} parent=1 // pred_check_branch
      %16 = sbr.rel (0) target = $region13
    $region12: #{tpu_custom_call.1} parent=1 // pred_region
      _
    $region13: #{tpu_custom_call.1} parent=1 // pred_fallthru
      _
    // Predicated region
    $region14: #{tpu_custom_call.1} parent=1 // pred_check
      _
    $region15: #{tpu_custom_call.1} parent=1 // pred_check_branch
      %18 = sbr.rel (0) target = $region17
    $region16: #{tpu_custom_call.1} parent=1 // pred_region
      _
    $region17: #{tpu_custom_call.1} parent=1 // pred_fallthru
      _
    // Predicated region
    $region18: #{tpu_custom_call.1} parent=1 // pred_check
      _
    $region19: #{tpu_custom_call.1} parent=1 // pred_check_branch
      %20 = sbr.rel (0) target = $region21
    $region20: #{tpu_custom_call.1} parent=1 // pred_region
      _
    $region21: #{tpu_custom_call.1} parent=1 // pred_fallthru
      _
    %v21 = vld [vmem:[%s0] sm:$0xff]
    %v22 = vld [vmem:[%s1] sm:$0xff]
    %v23 = vld [vmem:[%s1 + $0x8] sm:$0xff]
    %v24 = vld [vmem:[%s1 + $0x10] sm:$0xff]
    %v25 = vld [vmem:[%s1 + $0x18] sm:$0xff]
    %v26 = vld [vmem:[%s2] sm:$0x1]
    %v28 = vlaneseq
    %v29 = vshrl.u32 %v28, 7
    %v30 = vsub.s32 0, %v29
    %v31 = vrot.slane %v26, %v30
    %vm33 = vcmask 261120
    %v35 = vsel %vm33, %v21, 0
    %37 = vmatprep.subr.mxu0 0.0
    %38 = vmatpush1.msra.mxu0 %v22
    %39 = vmatprep.subr.mxu0 0.0
    %40 = vmatpush1.msra.mxu0 %v23
    %41 = vmatprep.subr.mxu0 0.0
    %42 = vmatpush1.msra.mxu0 %v24
    %43 = vmatprep.subr.mxu0 0.0
    %44 = vmatpush1.msra.mxu0 %v25
    %45 = vmatprep.subr.mxu0 0.0
    %46 = vmatpush1.msra.mxu0 0.0
    %47 = vmatprep.subr.mxu0 0.0
    %48 = vmatpush1.msra.mxu0 0.0
    %49 = vmatprep.subr.mxu0 0.0
    %50 = vmatpush1.msra.mxu0 0.0
    %51 = vmatprep.subr.mxu0 0.0
    %52 = vmatpush1.msra.mxu0 0.0
    %53 = vmatprep.subr.mxu0 0.0
    %54 = vmatpush1.msra.mxu0 0.0
    %55 = vmatprep.subr.mxu0 0.0
    %56 = vmatpush1.msra.mxu0 0.0
    %57 = vmatprep.subr.mxu0 0.0
    %58 = vmatpush1.msra.mxu0 0.0
    %59 = vmatprep.subr.mxu0 0.0
    %60 = vmatpush1.msra.mxu0 0.0
    %61 = vmatprep.subr.mxu0 0.0
    %62 = vmatpush1.msra.mxu0 0.0
    %63 = vmatprep.subr.mxu0 0.0
    %64 = vmatpush1.msra.mxu0 0.0
    %65 = vmatprep.subr.mxu0 0.0
    %66 = vmatpush1.msra.mxu0 0.0
    %67 = vmatprep.subr.mxu0 0.0
    %68 = vmatpush1.msra.mxu0 0.0
    %69 = vmatprep.subr.mxu0 0.0
    %70 = vmatpush1.msra.mxu0 0.0
    %71 = vmatprep.subr.mxu0 0.0
    %72 = vmatpush1.msra.mxu0 0.0
    %73 = vmatprep.subr.mxu0 0.0
    %74 = vmatpush1.msra.mxu0 0.0
    %75 = vmatprep.subr.mxu0 0.0
    %76 = vmatpush1.msra.mxu0 0.0
    %77 = vmatprep.subr.mxu0 0.0
    %78 = vmatpush1.msra.mxu0 0.0
    %79 = vmatprep.subr.mxu0 0.0
    %80 = vmatpush1.msra.mxu0 0.0
    %81 = vmatprep.subr.mxu0 0.0
    %82 = vmatpush1.msra.mxu0 0.0
    %83 = vmatprep.subr.mxu0 0.0
    %84 = vmatpush1.msra.mxu0 0.0
    %85 = vmatprep.subr.mxu0 0.0
    %86 = vmatpush1.msra.mxu0 0.0
    %87 = vmatprep.subr.mxu0 0.0
    %88 = vmatpush1.msra.mxu0 0.0
    %89 = vmatprep.subr.mxu0 0.0
    %90 = vmatpush1.msra.mxu0 0.0
    %91 = vmatprep.subr.mxu0 0.0
    %92 = vmatpush1.msra.mxu0 0.0
    %93 = vmatprep.subr.mxu0 0.0
    %94 = vmatpush1.msra.mxu0 0.0
    %95 = vmatprep.subr.mxu0 0.0
    %96 = vmatpush1.msra.mxu0 0.0
    %97 = vmatprep.subr.mxu0 0.0
    %98 = vmatpush1.msra.mxu0 0.0
    %99 = vmatprep.subr.mxu0 0.0
    %100 = vmatpush1.msra.mxu0 0.0
    %101 = vmatprep.mubr.f32.mxu0 0.0
    %102 = vmatmul.mubr.f32.gmra.mrb[0].mxu0 %v35
    %v103 = vpop.f32.mrb[0].mxu0
    %v104 = vadd.f32 %v31, %v103
    %v105 = vpop.f32.mrb[0].mxu0
    %106 = vdwg.mxu0
    %v107 = vld [vmem:[%s3] sm:$0x1]
    %v109 = vlaneseq
    %v110 = vshrl.u32 %v109, 7
    %v111 = vsub.s32 0, %v110
    %v112 = vrot.slane %v107, %v111
    %v114 = vmax.f32 %v104, %v112
    %v115 = vld [vmem:[%s4] sm:$0x1]
    %v117 = vlaneseq
    %v118 = vshrl.u32 %v117, 7
    %v119 = vsub.s32 0, %v118
    %v120 = vrot.slane %v115, %v119
    %v122 = vmin.f32 %v114, %v120
    %vm123 = vcmask 130048
    %124 = vst.msk [vmem:[#allocation2] sm:$0xff] %vm123, %v122
    // Predicated region
    $region22: #{tpu_custom_call.1} parent=1 // pred_check
      _
    $region23: #{tpu_custom_call.1} parent=1 // pred_check_branch
      %126 = sbr.rel (0) target = $region25
    $region24: #{tpu_custom_call.1} parent=1 // pred_region
      %s128 = ssub.s32 128, 128
      %129 = vsyncadd [#allocation3], %s128
      %s131 = sshll.u32 [#allocation2], 4
      %s132 = int_to_ptr.vmem [resolvable:$true] %s131
      %134 = dma.vmem_to_hbm [thread:$0]  %s132, 128, %s5, [#allocation3]
    $region25: #{tpu_custom_call.1} parent=1 // pred_fallthru
      _
    // Predicated region
    $region26: #{tpu_custom_call.1} parent=1 // pred_check
      _
    $region27: #{tpu_custom_call.1} parent=1 // pred_check_branch
      %136 = sbr.rel (0) target = $region29
    $region28: #{tpu_custom_call.1} parent=1 // pred_region
      %137 = dma.done [#allocation3], 128
    $region29: #{tpu_custom_call.1} parent=1 // pred_fallthru
      _
    %138 = vsyncpa [#allocation3], 1

</llo_original>
